<compile_context>
chip_gen: v7x
topology: tpu7x:2x2x1
jax: 0.10.0
libtpu: 0.0.40
codegen_flags: <defaults>
</compile_context>

<pallas_src>
import jax
import jax.numpy as jnp
from jax.experimental import pallas as pl
from jax.experimental.pallas import tpu as pltpu


def _round_up(v, m):
    return ((v + m - 1) // m) * m


def _vmem_budget_bytes():
    """~75% of physical VMEM; conservative 64 MiB (v7x per-TC) fallback."""
    phys = 64 * 1024 * 1024
    try:
        info = pltpu.get_tpu_info()
        cap = getattr(info, "vmem_capacity_bytes", None)
        if cap:
            phys = int(cap)
    except Exception:
        pass
    return (phys * 3) // 4


def _pick_tiles(B, D, x_item, w_item, out_item, budget):
    """Jointly pick (tile_b, tile_n) against a VMEM budget.

    Preference: fits budget > W fully resident (tile_n == D, no re-streaming) >
    >= 4 batch tiles (2 per v7x TensorCore) > 256-aligned tiles (v6e/v7x MXU) >
    larger tiles.
    """
    n_cands = [D]
    tn = D
    while tn % 2 == 0 and (tn // 2) % 128 == 0:
        tn //= 2
        n_cands.append(tn)

    b_cands = [c for c in (2048, 1024, 512, 256, 128, 64, 32, 16, 8) if B % c == 0]
    if not b_cands:
        b_cands = [B]

    def residency(tb, tn_):
        # Double-buffered x row block + W column block + output block + bias.
        return (2 * tb * D * x_item
                + 2 * D * tn_ * w_item
                + 2 * tb * tn_ * out_item
                + 2 * 8 * tn_ * 4)

    def score(tb, tn_):
        return (tn_ == D,                        # W fully resident
                min(B // tb, 4),                  # megacore + intra-core pipelining
                (tb % 256 == 0) or (tb == B),     # 256-row tiles for 2x256^2 MXU
                tn_ % 256 == 0,
                tb, tn_)

    best = None
    for tn_c in n_cands:
        for tb_c in b_cands:
            if residency(tb_c, tn_c) > budget:
                continue
            s = score(tb_c, tn_c)
            if best is None or s > best[0]:
                best = (s, tb_c, tn_c)
    if best is None:            # pathological: nothing fits; take the smallest tiles.
        return b_cands[-1], n_cands[-1]
    return best[1], best[2]


def _make_kernel(n_tiles, tile_n, n_axis, matmul_dtype):
    """Fused  out = x + relu(x @ W + b)  kernel body."""

    def kernel(x_ref, w_ref, b_ref, o_ref):
        # x_ref: (tile_b, D)   w_ref: (D, tile_n)   b_ref: (1, tile_n)
        # o_ref: (tile_b, tile_n)
        x = x_ref[...]                                       # original precision
        # Note: this cast is recomputed per N-tile when n_tiles > 1; it is VPU
        # filler under an MXU/HBM-bound regime, so accepted.
        xm = x.astype(matmul_dtype) if matmul_dtype is not None else x

        # MXU matmul with f32 accumulation.
        y = jnp.dot(xm, w_ref[...], preferred_element_type=jnp.float32)
        y = y + b_ref[...].astype(jnp.float32)               # bias (row broadcast)
        y = jnp.maximum(y, 0.0)                              # ReLU (VPU)

        if n_tiles == 1:
            x_res = x                                        # full-width: no slice
        else:
            # Residual only needs this N-chunk of the resident x row block.
            j = pl.program_id(n_axis)
            start = pl.multiple_of(j * tile_n, tile_n)
            x_res = x_ref[:, pl.ds(start, tile_n)]

        # Residual add in f32, single final cast.
        o_ref[...] = (x_res.astype(jnp.float32) + y).astype(o_ref.dtype)

    return kernel


def residual_forward(x, w, b, *, tile_b=None, tile_n=None, matmul_dtype="auto"):
    """out = x + relu(x @ w + b), fused in one Pallas TPU kernel.

    matmul_dtype: dtype used only inside the MXU matmul (accumulation, bias,
    ReLU and the residual add stay in float32).  "auto" -> bfloat16 for f32
    inputs (native/fast path on v6e/v7x, halves W HBM traffic); pass
    jnp.float32 (or None) to keep the matmul in the input dtype.
    """
    B, D = x.shape
    assert w.shape == (D, D) and b.shape == (D,)

    if isinstance(matmul_dtype, str) and matmul_dtype == "auto":
        matmul_dtype = jnp.bfloat16 if x.dtype == jnp.float32 else None
    if matmul_dtype is not None and jnp.dtype(matmul_dtype) == jnp.dtype(x.dtype):
        matmul_dtype = None

    # Pad features to a lane-dense multiple of 128 (unmasked vst stores) and
    # batch to a sublane multiple of 8; slice the result back at the end.
    D_pad = _round_up(D, 128)
    B_pad = _round_up(B, 8)
    if B_pad != B or D_pad != D:
        x = jnp.pad(x, ((0, B_pad - B), (0, D_pad - D)))
    if D_pad != D:
        w = jnp.pad(w, ((0, D_pad - D), (0, D_pad - D)))
        b = jnp.pad(b, (0, D_pad - D))

    if matmul_dtype is not None:
        w = w.astype(matmul_dtype)       # halves W HBM traffic + VMEM residency
    b2d = b.reshape(1, D_pad)

    x_item = jnp.dtype(x.dtype).itemsize
    w_item = jnp.dtype(w.dtype).itemsize
    out_item = x_item

    budget = _vmem_budget_bytes()
    if tile_b is None or tile_n is None:
        auto_tb, auto_tn = _pick_tiles(B_pad, D_pad, x_item, w_item, out_item, budget)
        tile_b = auto_tb if tile_b is None else tile_b
        tile_n = auto_tn if tile_n is None else tile_n
    assert B_pad % tile_b == 0 and D_pad % tile_n == 0
    assert tile_n % 128 == 0

    nb = B_pad // tile_b
    n_tiles = D_pad // tile_n

    # If N-tiling is needed, pick the grid order that minimizes re-streamed HBM
    # bytes: keep W resident across batch tiles when re-reading x (once per
    # N-tile) is cheaper than re-reading W (once per batch tile).
    x_bytes = B_pad * D_pad * x_item
    w_bytes = D_pad * D_pad * w_item
    w_resident = (n_tiles > 1 and nb > 1 and
                  x_bytes * (n_tiles - 1) < w_bytes * (nb - 1))

    if w_resident:
        grid = (n_tiles, nb)                  # N outer, batch inner: W resident
        n_axis = 0
        x_map = lambda j, i: (i, 0)
        w_map = lambda j, i: (0, j)
        b_map = lambda j, i: (0, j)
        o_map = lambda j, i: (i, j)
        x_reads, w_reads = (n_tiles if nb > 1 else 1), 1
    else:
        grid = (nb, n_tiles)                  # batch outer, N inner: x resident
        n_axis = 1
        x_map = lambda i, j: (i, 0)
        w_map = lambda i, j: (0, j)
        b_map = lambda i, j: (0, j)
        o_map = lambda i, j: (i, j)
        x_reads, w_reads = 1, (nb if n_tiles > 1 else 1)

    cost = pl.CostEstimate(
        flops=2 * B_pad * D_pad * D_pad,
        transcendentals=0,
        bytes_accessed=(x_bytes * x_reads
                        + w_bytes * w_reads
                        + D_pad * jnp.dtype(b2d.dtype).itemsize
                        + B_pad * D_pad * out_item),
    )

    out = pl.pallas_call(
        _make_kernel(n_tiles, tile_n, n_axis, matmul_dtype),
        out_shape=jax.ShapeDtypeStruct((B_pad, D_pad), x.dtype),
        grid_spec=pltpu.PrefetchScalarGridSpec(
            num_scalar_prefetch=0,
            grid=grid,
            in_specs=[
                pl.BlockSpec((tile_b, D_pad), x_map),    # x row tile (full K width)
                pl.BlockSpec((D_pad, tile_n), w_map),    # W column tile
                pl.BlockSpec((1, tile_n), b_map),        # bias chunk
            ],
            # Lane-dense output block (last dim a multiple of 128).
            out_specs=pl.BlockSpec((tile_b, tile_n), o_map),
        ),
        compiler_params=pltpu.CompilerParams(
            # No reduction axis: every (i, j) writes a disjoint output block.
            dimension_semantics=("parallel", "parallel"),
            vmem_limit_bytes=int(budget),
        ),
        cost_estimate=cost,
    )(x, w, b2d)

    if B_pad != B or D_pad != D:
        out = out[:B, :D]
    return out


if __name__ == "__main__":
    key = jax.random.PRNGKey(0)

    def make_inputs(k, B, D):
        kx, kw, kb = jax.random.split(k, 3)
        x = jax.random.normal(kx, (B, D), dtype=jnp.float32)
        w = jax.random.normal(kw, (D, D), dtype=jnp.float32) * (1.0 / jnp.sqrt(D))
        b = jax.random.normal(kb, (D,), dtype=jnp.float32) * 0.1
        return x, w, b

    def reference(x, w, b):
        # Residual semantics: x + fn(x), fn = Linear+ReLU.
        return x + jnp.maximum(x @ w + b, 0.0)

    k1, k2 = jax.random.split(key)

    # 1) Small DeepGOZero-like shapes (hidden=32 -> exercises the 128-padding path).
    x, w, b = make_inputs(k1, 8, 32)
    ref = reference(x, w, b)
    out = jax.block_until_ready(residual_forward(x, w, b, matmul_dtype=jnp.float32))
    assert jnp.allclose(out, ref, atol=1e-4, rtol=1e-4), "small f32 kernel mismatch"
    out_bf = jax.block_until_ready(residual_forward(x, w, b))   # default bf16 MXU path
    assert jnp.allclose(out_bf, ref, atol=1.5e-1, rtol=5e-2), "small bf16 kernel mismatch"

    # 2) Tile-friendly shapes: 4 batch tiles, 256-wide lanes, W fully resident.
    x, w, b = make_inputs(k2, 512, 256)
    ref = reference(x, w, b)
    out = jax.block_until_ready(residual_forward(x, w, b, matmul_dtype=jnp.float32))
    assert jnp.allclose(out, ref, atol=1e-4, rtol=1e-4), "f32 kernel mismatch"
    out_bf = jax.block_until_ready(residual_forward(x, w, b))
    assert jnp.allclose(out_bf, ref, atol=1.5e-1, rtol=5e-2), "bf16 kernel mismatch"

    # 3) Forced N-tiling to exercise both grid orders (x-resident and W-resident).
    out_nt = jax.block_until_ready(residual_forward(x, w, b, tile_n=128))
    assert jnp.allclose(out_nt, ref, atol=1.5e-1, rtol=5e-2), "N-tiled bf16 mismatch"
    out_wr = jax.block_until_ready(
        residual_forward(x, w, b, tile_n=128, matmul_dtype=jnp.float32))
    assert jnp.allclose(out_wr, ref, atol=1e-4, rtol=1e-4), "W-resident f32 mismatch"

    print("KERNEL_OK")
</pallas_src>

<mosaic_0001>
module attributes {stable_mosaic.version = 11 : i64} {
  func.func @kernel(%arg0: i32, %arg1: i32, %arg2: memref<8x128xf32, #tpu.memory_space<vmem>>, %arg3: memref<128x128xf32, #tpu.memory_space<vmem>>, %arg4: memref<1x128xf32, #tpu.memory_space<vmem>>, %arg5: memref<8x128xf32, #tpu.memory_space<vmem>>) attributes {dimension_semantics = [#tpu.dimension_semantics<parallel>, #tpu.dimension_semantics<parallel>], iteration_bounds = array<i64: 1, 1>, scalar_prefetch = 0 : i64, scratch_operands = 0 : i64, tpu.core_type = #tpu.core_type<tc>, window_params = [{transform_indices = @transform_0, window_bounds = array<i64: 8, 128>}, {transform_indices = @transform_1, window_bounds = array<i64: 128, 128>}, {transform_indices = @transform_2, window_bounds = array<i64: 1, 128>}, {transform_indices = @transform_3, window_bounds = array<i64: 8, 128>}]} {
    %c0 = arith.constant 0 : index
    %c0_0 = arith.constant 0 : index
    %0 = vector.load %arg2[%c0, %c0_0] : memref<8x128xf32, #tpu.memory_space<vmem>>, vector<8x128xf32>
    %c0_1 = arith.constant 0 : index
    %c0_2 = arith.constant 0 : index
    %1 = vector.load %arg3[%c0_1, %c0_2] : memref<128x128xf32, #tpu.memory_space<vmem>>, vector<128x128xf32>
    %cst = arith.constant dense<0.000000e+00> : vector<8x128xf32>
    %2 = tpu.matmul %0, %1, %cst {dimension_numbers = #tpu.dot_dimension_numbers<[1], [0], [0], [1], [0, 0, 1, 1], [], []>} : vector<8x128xf32>, vector<128x128xf32>, vector<8x128xf32> -> vector<8x128xf32>
    %c0_3 = arith.constant 0 : index
    %c0_4 = arith.constant 0 : index
    %3 = vector.load %arg4[%c0_3, %c0_4] : memref<1x128xf32, #tpu.memory_space<vmem>>, vector<1x128xf32>
    %4 = vector.broadcast %3 : vector<1x128xf32> to vector<8x128xf32>
    %5 = arith.addf %2, %4 : vector<8x128xf32>
    %cst_5 = arith.constant 0.000000e+00 : f32
    %6 = vector.broadcast %cst_5 : f32 to vector<8x128xf32>
    %7 = arith.maximumf %5, %6 : vector<8x128xf32>
    %8 = arith.addf %0, %7 : vector<8x128xf32>
    %c0_6 = arith.constant 0 : index
    %c0_7 = arith.constant 0 : index
    %9 = vector.load %arg5[%c0_6, %c0_7] : memref<8x128xf32, #tpu.memory_space<vmem>>, vector<8x128xf32>
    tpu.vector_store %arg5[%c0_6, %c0_7], %8 {strides = array<i32>} : memref<8x128xf32, #tpu.memory_space<vmem>>, vector<8x128xf32>,
    return
  }
  func.func @transform_0(%arg0: i32, %arg1: i32) -> (i32, i32) {
    %c0_i32 = arith.constant 0 : i32
    %c0_i32_0 = arith.constant 0 : i32
    return %arg0, %c0_i32 : i32, i32
  }
  func.func @transform_1(%arg0: i32, %arg1: i32) -> (i32, i32) {
    %c0_i32 = arith.constant 0 : i32
    %c0_i32_0 = arith.constant 0 : i32
    return %c0_i32, %arg1 : i32, i32
  }
  func.func @transform_2(%arg0: i32, %arg1: i32) -> (i32, i32) {
    %c0_i32 = arith.constant 0 : i32
    %c0_i32_0 = arith.constant 0 : i32
    return %c0_i32, %arg1 : i32, i32
  }
  func.func @transform_3(%arg0: i32, %arg1: i32) -> (i32, i32) {
    %c0_i32 = arith.constant 0 : i32
    return %arg0, %arg1 : i32, i32
  }
}

</mosaic_0001>

<llo_original>
// kernel: tpu_custom_call.1
$region0: #{tpu_custom_call.1}
  #allocation0 [shape = 'u32[]', space=smem, size = 0x4, offset = 0x4, fixed_abs, tag = 'smem constant byte address 0x4 - core index']
  #allocation1 [shape = 'u32[144,128]{1,0:T(1,128)}', space=vmem, size = 0x12000, scoped, tag = 'internal scratch']
  %s0 = inlined_call_operand.hbm [shape: f32[8,128], index: 0, kind: input, shape index: {}]
  %s1 = inlined_call_operand.hbm [shape: f32[128,128], index: 1, kind: input, shape index: {}]
  %s2 = inlined_call_operand.vmem [shape: f32[1,128], index: 2, kind: input, shape index: {}]
  %s3 = inlined_call_operand.hbm [shape: f32[8,128], index: 3, kind: output, shape index: {}]
  %s4 = sld [smem:[#allocation0]]
  $region30: #{tpu_custom_call.1} parent=0
    _
  %s6 = ssub.s32 1, %s4
  %s7 = scalar_select 0, %s6, %s4
  $region1: #{tpu_custom_call.1} parent=0
    #allocation2 [shape = 'u8[4096]{0}', space=vmem, size = 0x1000, scoped, tag = 'input window, operand 0, single buffered']
    #allocation3 [shape = 's32[1]{0}', space=sflag, size = 0x4, scoped, tag = 'scoped memory for tpu_custom_call.1']
    #allocation4 [shape = 's32[1]{0}', space=sflag, size = 0x4, scoped, tag = 'scoped memory for tpu_custom_call.1']
    #allocation5 [shape = 'u8[65536]{0}', space=vmem, size = 0x10000, scoped, tag = 'input window, operand 1, single buffered']
    #allocation6 [shape = 's32[1]{0}', space=sflag, size = 0x4, scoped, tag = 'scoped memory for tpu_custom_call.1']
    #allocation7 [shape = 'u8[4096]{0}', space=vmem, size = 0x1000, scoped, tag = 'output window, operand 0, single buffered']
    %8 = vsyncpa [#allocation3], 0
    %9 = vsyncpa [#allocation6], 0
    %10 = vsyncpa [#allocation4], 0
    // Predicated region
    $region2: #{tpu_custom_call.1} parent=1 // pred_check
      _
    $region3: #{tpu_custom_call.1} parent=1 // pred_check_branch
      %12 = sbr.rel (0) target = $region5
    $region4: #{tpu_custom_call.1} parent=1 // pred_region
      %s14 = ssub.s32 128, 128
      %15 = vsyncadd [#allocation3], %s14
      %s17 = sshll.u32 [#allocation2], 4
      %s18 = int_to_ptr.vmem [resolvable:$true] %s17
      %20 = dma.hbm_to_vmem [thread:$0]  %s0, 128, %s18, [#allocation3]
    $region5: #{tpu_custom_call.1} parent=1 // pred_fallthru
      _
    // Predicated region
    $region6: #{tpu_custom_call.1} parent=1 // pred_check
      _
    $region7: #{tpu_custom_call.1} parent=1 // pred_check_branch
      %22 = sbr.rel (0) target = $region9
    $region8: #{tpu_custom_call.1} parent=1 // pred_region
      %s24 = ssub.s32 2048, 2048
      %25 = vsyncadd [#allocation6], %s24
      %s26 = sshll.u32 [#allocation5], 4
      %s27 = int_to_ptr.vmem [resolvable:$true] %s26
      %32 = dma.hbm_to_vmem [thread:$0]  %s1, 2048, %s27, [#allocation6], 128, 128, 8
    $region9: #{tpu_custom_call.1} parent=1 // pred_fallthru
      _
    // Predicated region
    $region10: #{tpu_custom_call.1} parent=1 // pred_check
      _
    $region11: #{tpu_custom_call.1} parent=1 // pred_check_branch
      %34 = sbr.rel (0) target = $region13
    $region12: #{tpu_custom_call.1} parent=1 // pred_region
      _
    $region13: #{tpu_custom_call.1} parent=1 // pred_fallthru
      _
    // Predicated region
    $region14: #{tpu_custom_call.1} parent=1 // pred_check
      _
    $region15: #{tpu_custom_call.1} parent=1 // pred_check_branch
      %36 = sbr.rel (0) target = $region17
    $region16: #{tpu_custom_call.1} parent=1 // pred_region
      %37 = dma.done [#allocation3], 128
    $region17: #{tpu_custom_call.1} parent=1 // pred_fallthru
      _
    // Predicated region
    $region18: #{tpu_custom_call.1} parent=1 // pred_check
      _
    $region19: #{tpu_custom_call.1} parent=1 // pred_check_branch
      %39 = sbr.rel (0) target = $region21
    $region20: #{tpu_custom_call.1} parent=1 // pred_region
      %40 = dma.done [#allocation6], 2048
    $region21: #{tpu_custom_call.1} parent=1 // pred_fallthru
      _
    %v41 = vld [vmem:[#allocation2] sm:$0xff]
    %v42 = vld [vmem:[#allocation5] sm:$0xff]
    %v43 = vld [vmem:[#allocation5 + $0x8] sm:$0xff]
    %v44 = vld [vmem:[#allocation5 + $0x10] sm:$0xff]
    %v45 = vld [vmem:[#allocation5 + $0x18] sm:$0xff]
    %v46 = vld [vmem:[#allocation5 + $0x20] sm:$0xff]
    %v47 = vld [vmem:[#allocation5 + $0x28] sm:$0xff]
    %v48 = vld [vmem:[#allocation5 + $0x30] sm:$0xff]
    %v49 = vld [vmem:[#allocation5 + $0x38] sm:$0xff]
    %v50 = vld [vmem:[#allocation5 + $0x40] sm:$0xff]
    %v51 = vld [vmem:[#allocation5 + $0x48] sm:$0xff]
    %v52 = vld [vmem:[#allocation5 + $0x50] sm:$0xff]
    %v53 = vld [vmem:[#allocation5 + $0x58] sm:$0xff]
    %v54 = vld [vmem:[#allocation5 + $0x60] sm:$0xff]
    %v55 = vld [vmem:[#allocation5 + $0x68] sm:$0xff]
    %v56 = vld [vmem:[#allocation5 + $0x70] sm:$0xff]
    %v57 = vld [vmem:[#allocation5 + $0x78] sm:$0xff]
    %v58 = vld [vmem:[%s2] sm:$0x1]
    %v60 = vlaneseq
    %v61 = vshrl.u32 %v60, 7
    %v62 = vsub.s32 0, %v61
    %v63 = vrot.slane %v58, %v62
    %65 = vmatprep.subr.mxu0 0.0
    %66 = vmatpush1.msra.mxu0 %v42
    %67 = vmatprep.subr.mxu0 0.0
    %68 = vmatpush1.msra.mxu0 %v43
    %69 = vmatprep.subr.mxu0 0.0
    %70 = vmatpush1.msra.mxu0 %v44
    %71 = vmatprep.subr.mxu0 0.0
    %72 = vmatpush1.msra.mxu0 %v45
    %73 = vmatprep.subr.mxu0 0.0
    %74 = vmatpush1.msra.mxu0 %v46
    %75 = vmatprep.subr.mxu0 0.0
    %76 = vmatpush1.msra.mxu0 %v47
    %77 = vmatprep.subr.mxu0 0.0
    %78 = vmatpush1.msra.mxu0 %v48
    %79 = vmatprep.subr.mxu0 0.0
    %80 = vmatpush1.msra.mxu0 %v49
    %81 = vmatprep.subr.mxu0 0.0
    %82 = vmatpush1.msra.mxu0 %v50
    %83 = vmatprep.subr.mxu0 0.0
    %84 = vmatpush1.msra.mxu0 %v51
    %85 = vmatprep.subr.mxu0 0.0
    %86 = vmatpush1.msra.mxu0 %v52
    %87 = vmatprep.subr.mxu0 0.0
    %88 = vmatpush1.msra.mxu0 %v53
    %89 = vmatprep.subr.mxu0 0.0
    %90 = vmatpush1.msra.mxu0 %v54
    %91 = vmatprep.subr.mxu0 0.0
    %92 = vmatpush1.msra.mxu0 %v55
    %93 = vmatprep.subr.mxu0 0.0
    %94 = vmatpush1.msra.mxu0 %v56
    %95 = vmatprep.subr.mxu0 0.0
    %96 = vmatpush1.msra.mxu0 %v57
    %97 = vmatprep.subr.mxu0 0.0
    %98 = vmatpush1.msra.mxu0 0.0
    %99 = vmatprep.subr.mxu0 0.0
    %100 = vmatpush1.msra.mxu0 0.0
    %101 = vmatprep.subr.mxu0 0.0
    %102 = vmatpush1.msra.mxu0 0.0
    %103 = vmatprep.subr.mxu0 0.0
    %104 = vmatpush1.msra.mxu0 0.0
    %105 = vmatprep.subr.mxu0 0.0
    %106 = vmatpush1.msra.mxu0 0.0
    %107 = vmatprep.subr.mxu0 0.0
    %108 = vmatpush1.msra.mxu0 0.0
    %109 = vmatprep.subr.mxu0 0.0
    %110 = vmatpush1.msra.mxu0 0.0
    %111 = vmatprep.subr.mxu0 0.0
    %112 = vmatpush1.msra.mxu0 0.0
    %113 = vmatprep.subr.mxu0 0.0
    %114 = vmatpush1.msra.mxu0 0.0
    %115 = vmatprep.subr.mxu0 0.0
    %116 = vmatpush1.msra.mxu0 0.0
    %117 = vmatprep.subr.mxu0 0.0
    %118 = vmatpush1.msra.mxu0 0.0
    %119 = vmatprep.subr.mxu0 0.0
    %120 = vmatpush1.msra.mxu0 0.0
    %121 = vmatprep.subr.mxu0 0.0
    %122 = vmatpush1.msra.mxu0 0.0
    %123 = vmatprep.subr.mxu0 0.0
    %124 = vmatpush1.msra.mxu0 0.0
    %125 = vmatprep.subr.mxu0 0.0
    %126 = vmatpush1.msra.mxu0 0.0
    %127 = vmatprep.subr.mxu0 0.0
    %128 = vmatpush1.msra.mxu0 0.0
    %129 = vmatprep.mubr.f32.mxu0 0.0
    %130 = vmatmul.mubr.f32.gmra.mrb[0].mxu0 %v41
    %v131 = vpop.f32.mrb[0].mxu0
    %v132 = vadd.f32 %v63, %v131
    %v133 = vpop.f32.mrb[0].mxu0
    %134 = vdwg.mxu0
    %v135 = vmax.f32 %v132, 0.0
    %v136 = vadd.f32 %v41, %v135
    %137 = vst [vmem:[#allocation7] sm:$0xff] %v136
    // Predicated region
    $region22: #{tpu_custom_call.1} parent=1 // pred_check
      _
    $region23: #{tpu_custom_call.1} parent=1 // pred_check_branch
      %139 = sbr.rel (0) target = $region25
    $region24: #{tpu_custom_call.1} parent=1 // pred_region
      %s141 = ssub.s32 128, 128
      %142 = vsyncadd [#allocation4], %s141
      %s144 = sshll.u32 [#allocation7], 4
      %s145 = int_to_ptr.vmem [resolvable:$true] %s144
      %147 = dma.vmem_to_hbm [thread:$0]  %s145, 128, %s3, [#allocation4]
    $region25: #{tpu_custom_call.1} parent=1 // pred_fallthru
      _
    // Predicated region
    $region26: #{tpu_custom_call.1} parent=1 // pred_check
      _
    $region27: #{tpu_custom_call.1} parent=1 // pred_check_branch
      %149 = sbr.rel (0) target = $region29
    $region28: #{tpu_custom_call.1} parent=1 // pred_region
      %150 = dma.done [#allocation4], 128
    $region29: #{tpu_custom_call.1} parent=1 // pred_fallthru
      _
    %151 = vsyncpa [#allocation3], 1
    %152 = vsyncpa [#allocation6], 1
    %153 = vsyncpa [#allocation4], 1

</llo_original>
